<compile_context>
chip_gen: v6e
topology: v6e:2x2x1
jax: 0.10.0
libtpu: 0.0.40
codegen_flags: <defaults>
</compile_context>

<pallas_src>
import functools

import jax
import jax.numpy as jnp
from jax.experimental import pallas as pl
from jax.experimental.pallas import tpu as pltpu


def _resmlp_kernel(xT_ref,
                   w0_ref, b0_ref,
                   w1_ref, b1_ref,
                   w2_ref, b2_ref,
                   w3_ref, b3_ref,
                   oT_ref,
                   *, mxu_dtype):
    """Fused 4-layer residual MLP on one lane-dense [C, tile_n] activation slab.

    y^T = W @ x^T + b  (== torch's x @ W^T + b).  MXU operands are cast to
    `mxu_dtype`; accumulation / bias / ReLU / residual stay in f32.
    """
    xT = xT_ref[...].astype(mxu_dtype)                       # [c_in, tn]

    x0 = jnp.dot(w0_ref[...].astype(mxu_dtype), xT,
                 preferred_element_type=jnp.float32) + b0_ref[...]
    h0 = jnp.maximum(x0, 0.0)                                # [W, tn] f32

    x1 = jnp.dot(w1_ref[...].astype(mxu_dtype), h0.astype(mxu_dtype),
                 preferred_element_type=jnp.float32) + b1_ref[...]
    h1 = jnp.maximum(x1, 0.0)

    x2 = jnp.dot(w2_ref[...].astype(mxu_dtype), h1.astype(mxu_dtype),
                 preferred_element_type=jnp.float32) + b2_ref[...]
    h2 = jnp.maximum(x2 + x0, 0.0)                           # residual add (f32)

    x3 = jnp.dot(w3_ref[...].astype(mxu_dtype), h2.astype(mxu_dtype),
                 preferred_element_type=jnp.float32) + b3_ref[...]
    oT_ref[...] = x3.astype(oT_ref.dtype)                    # lane-dense store


def _round_up(n, m):
    return ((n + m - 1) // m) * m


def _default_vmem_limit():
    """Generation-aware VMEM budget: ~3/4 of physical, capped at 100 MiB.

    v7x (64 MiB/TC) -> 48 MiB;  v5e/v6e (128 MiB) -> 96 MiB.
    """
    try:
        cap = int(pltpu.get_tpu_info().vmem_capacity_bytes)
    except Exception:
        cap = 64 * 1024 * 1024
    return min((cap * 3) // 4, 100 * 1024 * 1024)


def _pick_tile_n(n_rows, c_in, w_dim, c_out, act_bytes, out_bytes,
                 vmem_limit_bytes, mxu_bf16):
    """Largest lane tile (multiple of 128) whose working set fits the budget,
    shrunk only enough to guarantee >= 2 grid tiles (megacore sharding)."""
    per_row = 2 * (c_in * act_bytes + c_out * out_bytes)     # double-buffered I/O slabs
    per_row += (c_in + 4 * w_dim + c_out) * 4                # f32 intermediates
    if mxu_bf16:
        per_row += (c_in + 3 * w_dim) * 2                    # bf16 MXU operand copies
    budget = max(vmem_limit_bytes // 2, 1 << 20)             # headroom for compiler scratch
    tile = (budget // per_row) // 128 * 128
    tile = max(128, min(tile, 65536))
    # Keep >= 2 tiles so "parallel" grid sharding can feed both v7x TensorCores.
    two_tile = _round_up(pl.cdiv(n_rows, 2), 128)
    return max(128, min(tile, two_tile))


def resmlp_forward_cn(xT, params, *, tile_n=None, mxu_bf16=True,
                      out_dtype=None, vmem_limit_bytes=None):
    """Lane-dense path.  xT: [in_channel, N].  Returns [out_channel, N].

    params: torch layout -- w{k}: [C_out, C_in], b{k}: [C_out, 1] (kept f32).
    """
    c_in, n = xT.shape
    w_dim = params["w0"].shape[0]
    c_out = params["w3"].shape[0]
    out_dtype = xT.dtype if out_dtype is None else out_dtype
    if vmem_limit_bytes is None:
        vmem_limit_bytes = _default_vmem_limit()

    if tile_n is None:
        tile_n = _pick_tile_n(n, c_in, w_dim, c_out,
                              jnp.dtype(xT.dtype).itemsize,
                              jnp.dtype(out_dtype).itemsize,
                              vmem_limit_bytes, mxu_bf16)
    # tile_n must be a multiple of 128 (lane tiling); no N-divisibility needed.
    grid = (pl.cdiv(n, tile_n),)

    def resident(arr):
        shape = arr.shape
        return pl.BlockSpec(shape, lambda i: (0,) * len(shape))

    in_specs = [
        pl.BlockSpec((c_in, tile_n), lambda i: (0, i)),       # activation slab
        resident(params["w0"]), resident(params["b0"]),
        resident(params["w1"]), resident(params["b1"]),
        resident(params["w2"]), resident(params["b2"]),
        resident(params["w3"]), resident(params["b3"]),
    ]
    out_specs = pl.BlockSpec((c_out, tile_n), lambda i: (0, i))

    kernel = functools.partial(
        _resmlp_kernel,
        mxu_dtype=jnp.bfloat16 if mxu_bf16 else jnp.float32)

    return pl.pallas_call(
        kernel,
        out_shape=jax.ShapeDtypeStruct((c_out, n), out_dtype),
        grid_spec=pltpu.PrefetchScalarGridSpec(
            num_scalar_prefetch=0,
            grid=grid,
            in_specs=in_specs,
            out_specs=out_specs,
        ),
        compiler_params=pltpu.CompilerParams(
            dimension_semantics=("parallel",),
            vmem_limit_bytes=vmem_limit_bytes,
        ),
    )(xT, params["w0"], params["b0"], params["w1"], params["b1"],
      params["w2"], params["b2"], params["w3"], params["b3"])


def resmlp_forward(x, params, **kwargs):
    """Torch-layout convenience wrapper.  x: [N, in_channel] -> [N, out_channel].

    The two transposes here each cost an extra HBM pass; performance-critical
    callers should adopt the [C, N] contract and call resmlp_forward_cn.
    """
    return resmlp_forward_cn(x.T, params, **kwargs).T


def init_resmlp_params(key, in_channel, W, out_channel):
    """Deterministic synthetic init (uniform, akin to torch Linear default bounds)."""
    dims = [(in_channel, W), (W, W), (W, W), (W, out_channel)]
    params = {}
    for idx, (fan_in, fan_out) in enumerate(dims):
        key, kw, kb = jax.random.split(key, 3)
        bound = 1.0 / float(fan_in) ** 0.5
        params[f"w{idx}"] = jax.random.uniform(
            kw, (fan_out, fan_in), jnp.float32, -bound, bound)  # torch layout [out, in]
        params[f"b{idx}"] = jax.random.uniform(
            kb, (fan_out, 1), jnp.float32, -bound, bound)
    return params


def resmlp_reference(x, p):
    lin = lambda h, w, b: h @ w.T + b[:, 0]
    x0 = lin(x, p["w0"], p["b0"])
    x1 = lin(jnp.maximum(x0, 0.0), p["w1"], p["b1"])
    x2 = lin(jnp.maximum(x1, 0.0), p["w2"], p["b2"])
    return lin(jnp.maximum(x2 + x0, 0.0), p["w3"], p["b3"])


if __name__ == "__main__":
    key = jax.random.PRNGKey(0)
    in_channel, W, out_channel = 8, 32, 16
    N = 1000   # deliberately NOT a multiple of 128 -> exercises masked last block

    kx, kp = jax.random.split(key)
    x = jax.random.normal(kx, (N, in_channel), jnp.float32)
    params = init_resmlp_params(kp, in_channel, W, out_channel)

    ref = resmlp_reference(x, params)

    # 1) f32 MXU, explicit small tile: multi-tile grid + masked partial last tile.
    out_f32 = jax.block_until_ready(
        resmlp_forward(x, params, tile_n=512, mxu_bf16=False))
    assert out_f32.shape == (N, out_channel)
    assert jnp.allclose(out_f32, ref, atol=1e-4, rtol=1e-4)

    # 2) Default path: auto (generation-aware) tile, bf16 MXU operands, f32 accum.
    out_def = jax.block_until_ready(resmlp_forward(x, params))
    assert out_def.shape == (N, out_channel)
    assert jnp.allclose(out_def, ref, atol=5e-2, rtol=5e-2)

    # 3) Lane-dense [C, N] contract (no wrapper transpose passes) + bf16 output.
    outT = jax.block_until_ready(
        resmlp_forward_cn(x.T, params, out_dtype=jnp.bfloat16))
    assert outT.shape == (out_channel, N)
    assert jnp.allclose(outT.T.astype(jnp.float32), ref, atol=5e-2, rtol=5e-2)

    print("KERNEL_OK")
</pallas_src>

<mosaic_0001>
module attributes {stable_mosaic.version = 11 : i64} {
  func.func @_resmlp_kernel(%arg0: i32, %arg1: memref<8x512xf32, #tpu.memory_space<vmem>>, %arg2: memref<32x8xf32, #tpu.memory_space<vmem>>, %arg3: memref<32x1xf32, #tpu.memory_space<vmem>>, %arg4: memref<32x32xf32, #tpu.memory_space<vmem>>, %arg5: memref<32x1xf32, #tpu.memory_space<vmem>>, %arg6: memref<32x32xf32, #tpu.memory_space<vmem>>, %arg7: memref<32x1xf32, #tpu.memory_space<vmem>>, %arg8: memref<16x32xf32, #tpu.memory_space<vmem>>, %arg9: memref<16x1xf32, #tpu.memory_space<vmem>>, %arg10: memref<16x512xf32, #tpu.memory_space<vmem>>) attributes {dimension_semantics = [#tpu.dimension_semantics<parallel>], iteration_bounds = array<i64: 2>, scalar_prefetch = 0 : i64, scratch_operands = 0 : i64, tpu.core_type = #tpu.core_type<tc>, window_params = [{transform_indices = @transform_0, window_bounds = array<i64: 8, 512>}, {pipeline_mode = #tpu.pipeline_mode<synchronous>, transform_indices = @transform_1, window_bounds = array<i64: 32, 8>}, {pipeline_mode = #tpu.pipeline_mode<synchronous>, transform_indices = @transform_2, window_bounds = array<i64: 32, 1>}, {pipeline_mode = #tpu.pipeline_mode<synchronous>, transform_indices = @transform_3, window_bounds = array<i64: 32, 32>}, {pipeline_mode = #tpu.pipeline_mode<synchronous>, transform_indices = @transform_4, window_bounds = array<i64: 32, 1>}, {pipeline_mode = #tpu.pipeline_mode<synchronous>, transform_indices = @transform_5, window_bounds = array<i64: 32, 32>}, {pipeline_mode = #tpu.pipeline_mode<synchronous>, transform_indices = @transform_6, window_bounds = array<i64: 32, 1>}, {pipeline_mode = #tpu.pipeline_mode<synchronous>, transform_indices = @transform_7, window_bounds = array<i64: 16, 32>}, {pipeline_mode = #tpu.pipeline_mode<synchronous>, transform_indices = @transform_8, window_bounds = array<i64: 16, 1>}, {transform_indices = @transform_9, window_bounds = array<i64: 16, 512>}]} {
    %c0 = arith.constant 0 : index
    %c0_0 = arith.constant 0 : index
    %0 = vector.load %arg1[%c0, %c0_0] : memref<8x512xf32, #tpu.memory_space<vmem>>, vector<8x512xf32>
    %c0_1 = arith.constant 0 : index
    %c0_2 = arith.constant 0 : index
    %1 = vector.load %arg2[%c0_1, %c0_2] : memref<32x8xf32, #tpu.memory_space<vmem>>, vector<32x8xf32>
    %cst = arith.constant dense<0.000000e+00> : vector<32x512xf32>
    %2 = tpu.matmul %1, %0, %cst {dimension_numbers = #tpu.dot_dimension_numbers<[1], [0], [0], [1], [0, 0, 1, 1], [], []>} : vector<32x8xf32>, vector<8x512xf32>, vector<32x512xf32> -> vector<32x512xf32>
    %c0_3 = arith.constant 0 : index
    %c0_4 = arith.constant 0 : index
    %3 = vector.load %arg3[%c0_3, %c0_4] : memref<32x1xf32, #tpu.memory_space<vmem>>, vector<32x1xf32>
    %4 = vector.broadcast %3 : vector<32x1xf32> to vector<32x512xf32>
    %5 = arith.addf %2, %4 : vector<32x512xf32>
    %cst_5 = arith.constant 0.000000e+00 : f32
    %6 = vector.broadcast %cst_5 : f32 to vector<32x512xf32>
    %7 = arith.maximumf %5, %6 : vector<32x512xf32>
    %c0_6 = arith.constant 0 : index
    %c0_7 = arith.constant 0 : index
    %8 = vector.load %arg4[%c0_6, %c0_7] : memref<32x32xf32, #tpu.memory_space<vmem>>, vector<32x32xf32>
    %cst_8 = arith.constant dense<0.000000e+00> : vector<32x512xf32>
    %9 = tpu.matmul %8, %7, %cst_8 {dimension_numbers = #tpu.dot_dimension_numbers<[1], [0], [0], [1], [0, 0, 1, 1], [], []>} : vector<32x32xf32>, vector<32x512xf32>, vector<32x512xf32> -> vector<32x512xf32>
    %c0_9 = arith.constant 0 : index
    %c0_10 = arith.constant 0 : index
    %10 = vector.load %arg5[%c0_9, %c0_10] : memref<32x1xf32, #tpu.memory_space<vmem>>, vector<32x1xf32>
    %11 = vector.broadcast %10 : vector<32x1xf32> to vector<32x512xf32>
    %12 = arith.addf %9, %11 : vector<32x512xf32>
    %cst_11 = arith.constant 0.000000e+00 : f32
    %13 = vector.broadcast %cst_11 : f32 to vector<32x512xf32>
    %14 = arith.maximumf %12, %13 : vector<32x512xf32>
    %c0_12 = arith.constant 0 : index
    %c0_13 = arith.constant 0 : index
    %15 = vector.load %arg6[%c0_12, %c0_13] : memref<32x32xf32, #tpu.memory_space<vmem>>, vector<32x32xf32>
    %cst_14 = arith.constant dense<0.000000e+00> : vector<32x512xf32>
    %16 = tpu.matmul %15, %14, %cst_14 {dimension_numbers = #tpu.dot_dimension_numbers<[1], [0], [0], [1], [0, 0, 1, 1], [], []>} : vector<32x32xf32>, vector<32x512xf32>, vector<32x512xf32> -> vector<32x512xf32>
    %c0_15 = arith.constant 0 : index
    %c0_16 = arith.constant 0 : index
    %17 = vector.load %arg7[%c0_15, %c0_16] : memref<32x1xf32, #tpu.memory_space<vmem>>, vector<32x1xf32>
    %18 = vector.broadcast %17 : vector<32x1xf32> to vector<32x512xf32>
    %19 = arith.addf %16, %18 : vector<32x512xf32>
    %20 = arith.addf %19, %5 : vector<32x512xf32>
    %cst_17 = arith.constant 0.000000e+00 : f32
    %21 = vector.broadcast %cst_17 : f32 to vector<32x512xf32>
    %22 = arith.maximumf %20, %21 : vector<32x512xf32>
    %c0_18 = arith.constant 0 : index
    %c0_19 = arith.constant 0 : index
    %23 = vector.load %arg8[%c0_18, %c0_19] : memref<16x32xf32, #tpu.memory_space<vmem>>, vector<16x32xf32>
    %cst_20 = arith.constant dense<0.000000e+00> : vector<16x512xf32>
    %24 = tpu.matmul %23, %22, %cst_20 {dimension_numbers = #tpu.dot_dimension_numbers<[1], [0], [0], [1], [0, 0, 1, 1], [], []>} : vector<16x32xf32>, vector<32x512xf32>, vector<16x512xf32> -> vector<16x512xf32>
    %c0_21 = arith.constant 0 : index
    %c0_22 = arith.constant 0 : index
    %25 = vector.load %arg9[%c0_21, %c0_22] : memref<16x1xf32, #tpu.memory_space<vmem>>, vector<16x1xf32>
    %26 = vector.broadcast %25 : vector<16x1xf32> to vector<16x512xf32>
    %27 = arith.addf %24, %26 : vector<16x512xf32>
    %c0_23 = arith.constant 0 : index
    %c0_24 = arith.constant 0 : index
    %28 = vector.load %arg10[%c0_23, %c0_24] : memref<16x512xf32, #tpu.memory_space<vmem>>, vector<16x512xf32>
    tpu.vector_store %arg10[%c0_23, %c0_24], %27 {strides = array<i32>} : memref<16x512xf32, #tpu.memory_space<vmem>>, vector<16x512xf32>,
    return
  }
  func.func @transform_0(%arg0: i32) -> (i32, i32) {
    %c0_i32 = arith.constant 0 : i32
    %c0_i32_0 = arith.constant 0 : i32
    return %c0_i32, %arg0 : i32, i32
  }
  func.func @transform_1(%arg0: i32) -> (i32, i32) {
    %c0_i32 = arith.constant 0 : i32
    %c0_i32_0 = arith.constant 0 : i32
    %c0_i32_1 = arith.constant 0 : i32
    return %c0_i32, %c0_i32_0 : i32, i32
  }
  func.func @transform_2(%arg0: i32) -> (i32, i32) {
    %c0_i32 = arith.constant 0 : i32
    %c0_i32_0 = arith.constant 0 : i32
    %c0_i32_1 = arith.constant 0 : i32
    return %c0_i32, %c0_i32_0 : i32, i32
  }
  func.func @transform_3(%arg0: i32) -> (i32, i32) {
    %c0_i32 = arith.constant 0 : i32
    %c0_i32_0 = arith.constant 0 : i32
    %c0_i32_1 = arith.constant 0 : i32
    return %c0_i32, %c0_i32_0 : i32, i32
  }
  func.func @transform_4(%arg0: i32) -> (i32, i32) {
    %c0_i32 = arith.constant 0 : i32
    %c0_i32_0 = arith.constant 0 : i32
    %c0_i32_1 = arith.constant 0 : i32
    return %c0_i32, %c0_i32_0 : i32, i32
  }
  func.func @transform_5(%arg0: i32) -> (i32, i32) {
    %c0_i32 = arith.constant 0 : i32
    %c0_i32_0 = arith.constant 0 : i32
    %c0_i32_1 = arith.constant 0 : i32
    return %c0_i32, %c0_i32_0 : i32, i32
  }
  func.func @transform_6(%arg0: i32) -> (i32, i32) {
    %c0_i32 = arith.constant 0 : i32
    %c0_i32_0 = arith.constant 0 : i32
    %c0_i32_1 = arith.constant 0 : i32
    return %c0_i32, %c0_i32_0 : i32, i32
  }
  func.func @transform_7(%arg0: i32) -> (i32, i32) {
    %c0_i32 = arith.constant 0 : i32
    %c0_i32_0 = arith.constant 0 : i32
    %c0_i32_1 = arith.constant 0 : i32
    return %c0_i32, %c0_i32_0 : i32, i32
  }
  func.func @transform_8(%arg0: i32) -> (i32, i32) {
    %c0_i32 = arith.constant 0 : i32
    %c0_i32_0 = arith.constant 0 : i32
    %c0_i32_1 = arith.constant 0 : i32
    return %c0_i32, %c0_i32_0 : i32, i32
  }
  func.func @transform_9(%arg0: i32) -> (i32, i32) {
    %c0_i32 = arith.constant 0 : i32
    %c0_i32_0 = arith.constant 0 : i32
    return %c0_i32, %arg0 : i32, i32
  }
}

</mosaic_0001>

<llo_original>
// kernel: tpu_custom_call.1
$region0: #{tpu_custom_call.1}
  #allocation0 [shape = 'u32[]', space=smem, size = 0x4, offset = 0x4, fixed_abs, tag = 'smem constant byte address 0x4 - core index']
  #allocation1 [shape = 'u32[144,128]{1,0:T(1,128)}', space=vmem, size = 0x12000, scoped, tag = 'internal scratch']
  %s0 = inlined_call_operand.vmem [shape: f32[8,1000], index: 0, kind: input, shape index: {}]
  %s1 = inlined_call_operand.vmem [shape: f32[32,8], index: 1, kind: input, shape index: {}]
  %s2 = inlined_call_operand.vmem [shape: f32[32,1], index: 2, kind: input, shape index: {}]
  %s3 = inlined_call_operand.vmem [shape: f32[32,32], index: 3, kind: input, shape index: {}]
  %s4 = inlined_call_operand.vmem [shape: f32[32,1], index: 4, kind: input, shape index: {}]
  %s5 = inlined_call_operand.vmem [shape: f32[32,32], index: 5, kind: input, shape index: {}]
  %s6 = inlined_call_operand.vmem [shape: f32[32,1], index: 6, kind: input, shape index: {}]
  %s7 = inlined_call_operand.vmem [shape: f32[16,32], index: 7, kind: input, shape index: {}]
  %s8 = inlined_call_operand.vmem [shape: f32[16,1], index: 8, kind: input, shape index: {}]
  %s9 = inlined_call_operand.hbm [shape: f32[16,1000], index: 9, kind: output, shape index: {}]
  %s10 = sld [smem:[#allocation0]]
  $region69: #{tpu_custom_call.1} parent=0
    _
  %s12 = ssub.s32 1, %s10
  %s13 = scalar_select 0, %s12, %s10
  $region1: #{tpu_custom_call.1} parent=0
    #allocation2 [shape = 'u8[65536]{0}', space=vmem, size = 0x10000, scoped, tag = 'output window, operand 0']
    #allocation3 [shape = 's32[2]{0}', space=sflag, size = 0x8, scoped, tag = 'scoped memory for tpu_custom_call.1']
    %14 = vsyncpa [#allocation3], 0
    %s15 = scalar_lea.sflag [#allocation3], 1
    %16 = vsyncpa %s15, 0
    loop: start=0, step=1, limit=4
    $region2: #{tpu_custom_call.1} parent=1 // loop_pre_header
      _
    $region3: #{tpu_custom_call.1} parent=1 // loop_header
      %s18 = sphi 0, %s22
      %p19 = scmp.ge.s32.totalorder %s18, 4
      %s28 = sphi 0, %s30
      %s31 = sphi 0, %s28
      %s32 = sphi 0, %s31
      %s48 = sphi 0, %s32
      %s52 = sphi 0, %s52
      %s54 = sphi 0, %s52
      %s55 = sphi 0, %s54
      %s69 = sphi 0, %s55
      %s73 = sphi 0, %s73
      %s75 = sphi 0, %s73
      %s76 = sphi 0, %s75
      %s90 = sphi 0, %s76
      %s94 = sphi 0, %s94
      %s96 = sphi 0, %s94
      %s97 = sphi 0, %s96
      %s111 = sphi 0, %s97
      %s115 = sphi 0, %s115
      %s117 = sphi 0, %s115
      %s118 = sphi 0, %s117
      %s132 = sphi 0, %s118
      %s136 = sphi 0, %s136
      %s138 = sphi 0, %s136
      %s139 = sphi 0, %s138
      %s153 = sphi 0, %s139
      %s157 = sphi 0, %s157
      %s159 = sphi 0, %s157
      %s160 = sphi 0, %s159
      %s174 = sphi 0, %s160
      %s178 = sphi 0, %s178
      %s180 = sphi 0, %s178
      %s181 = sphi 0, %s180
      %s195 = sphi 0, %s181
      %s199 = sphi 0, %s199
      %s201 = sphi 0, %s199
      %s202 = sphi 0, %s201
      %s216 = sphi 0, %s202
      %s222 = sphi 0, %s224
      %s225 = sphi 0, %s222
      %s226 = sphi 0, %s225
      %s242 = sphi 0, %s226
    $region4: #{tpu_custom_call.1} parent=1 // loop_header_branch
      %21 = sbr.rel (%p19) target = $region8
    $region5: #{tpu_custom_call.1} parent=1 // loop_body
      %s23 = ssub.s32 %s18, 1
      %s24 = ssub.s32 %s18, 2
      %s25 = sadd.s32 %s18, 1
      %s26 = ssub.s32 %s18, %s25
      %p27 = scmp.eq.s32.totalorder %s26, 0
      %s29 = sadd.s32 %s28, 1
      %s30 = scalar_select %p27, %s28, %s29
      %p33 = pneg %p27
      %p34 = scmp.eq.s32.totalorder %s18, 1
      %p35 = por %p33, %p34
      %p36 = scmp.ne.s32.totalorder %s28, %s31
      %p37 = scmp.eq.s32.totalorder %s18, 0
      %p38 = por %p36, %p37
      %p39 = scmp.ne.s32.totalorder %s28, %s31
      %p40 = scmp.eq.s32.totalorder %s23, 1
      %p41 = por %p39, %p40
      %p42 = scmp.ne.s32.totalorder %s31, %s32
      %p43 = scmp.eq.s32.totalorder %s23, 0
      %p44 = por %p42, %p43
      %p45 = scmp.ne.s32.totalorder %s31, %s32
      %p46 = scmp.eq.s32.totalorder %s24, 1
      %p47 = por %p45, %p46
      %p49 = scmp.ne.s32.totalorder %s32, %s48
      %p50 = scmp.eq.s32.totalorder %s24, 0
      %p51 = por %p49, %p50
      %s53 = sadd.s32 %s52, 1
      %p56 = scmp.eq.s32.totalorder %s18, 1
      %p57 = scmp.ne.s32.totalorder %s52, %s54
      %p58 = scmp.eq.s32.totalorder %s18, 0
      %p59 = por %p57, %p58
      %p60 = scmp.ne.s32.totalorder %s52, %s54
      %p61 = scmp.eq.s32.totalorder %s23, 1
      %p62 = por %p60, %p61
      %p63 = scmp.ne.s32.totalorder %s54, %s55
      %p64 = scmp.eq.s32.totalorder %s23, 0
      %p65 = por %p63, %p64
      %p66 = scmp.ne.s32.totalorder %s54, %s55
      %p67 = scmp.eq.s32.totalorder %s24, 1
      %p68 = por %p66, %p67
      %p70 = scmp.ne.s32.totalorder %s55, %s69
      %p71 = scmp.eq.s32.totalorder %s24, 0
      %p72 = por %p70, %p71
      %s74 = sadd.s32 %s73, 1
      %p77 = scmp.eq.s32.totalorder %s18, 1
      %p78 = scmp.ne.s32.totalorder %s73, %s75
      %p79 = scmp.eq.s32.totalorder %s18, 0
      %p80 = por %p78, %p79
      %p81 = scmp.ne.s32.totalorder %s73, %s75
      %p82 = scmp.eq.s32.totalorder %s23, 1
      %p83 = por %p81, %p82
      %p84 = scmp.ne.s32.totalorder %s75, %s76
      %p85 = scmp.eq.s32.totalorder %s23, 0
      %p86 = por %p84, %p85
      %p87 = scmp.ne.s32.totalorder %s75, %s76
      %p88 = scmp.eq.s32.totalorder %s24, 1
      %p89 = por %p87, %p88
      %p91 = scmp.ne.s32.totalorder %s76, %s90
      %p92 = scmp.eq.s32.totalorder %s24, 0
      %p93 = por %p91, %p92
      %s95 = sadd.s32 %s94, 1
      %p98 = scmp.eq.s32.totalorder %s18, 1
      %p99 = scmp.ne.s32.totalorder %s94, %s96
      %p100 = scmp.eq.s32.totalorder %s18, 0
      %p101 = por %p99, %p100
      %p102 = scmp.ne.s32.totalorder %s94, %s96
      %p103 = scmp.eq.s32.totalorder %s23, 1
      %p104 = por %p102, %p103
      %p105 = scmp.ne.s32.totalorder %s96, %s97
      %p106 = scmp.eq.s32.totalorder %s23, 0
      %p107 = por %p105, %p106
      %p108 = scmp.ne.s32.totalorder %s96, %s97
      %p109 = scmp.eq.s32.totalorder %s24, 1
      %p110 = por %p108, %p109
      %p112 = scmp.ne.s32.totalorder %s97, %s111
      %p113 = scmp.eq.s32.totalorder %s24, 0
      %p114 = por %p112, %p113
      %s116 = sadd.s32 %s115, 1
      %p119 = scmp.eq.s32.totalorder %s18, 1
      %p120 = scmp.ne.s32.totalorder %s115, %s117
      %p121 = scmp.eq.s32.totalorder %s18, 0
      %p122 = por %p120, %p121
      %p123 = scmp.ne.s32.totalorder %s115, %s117
      %p124 = scmp.eq.s32.totalorder %s23, 1
      %p125 = por %p123, %p124
      %p126 = scmp.ne.s32.totalorder %s117, %s118
      %p127 = scmp.eq.s32.totalorder %s23, 0
      %p128 = por %p126, %p127
      %p129 = scmp.ne.s32.totalorder %s117, %s118
      %p130 = scmp.eq.s32.totalorder %s24, 1
      %p131 = por %p129, %p130
      %p133 = scmp.ne.s32.totalorder %s118, %s132
      %p134 = scmp.eq.s32.totalorder %s24, 0
      %p135 = por %p133, %p134
      %s137 = sadd.s32 %s136, 1
      %p140 = scmp.eq.s32.totalorder %s18, 1
      %p141 = scmp.ne.s32.totalorder %s136, %s138
      %p142 = scmp.eq.s32.totalorder %s18, 0
      %p143 = por %p141, %p142
      %p144 = scmp.ne.s32.totalorder %s136, %s138
      %p145 = scmp.eq.s32.totalorder %s23, 1
      %p146 = por %p144, %p145
      %p147 = scmp.ne.s32.totalorder %s138, %s139
      %p148 = scmp.eq.s32.totalorder %s23, 0
      %p149 = por %p147, %p148
      %p150 = scmp.ne.s32.totalorder %s138, %s139
      %p151 = scmp.eq.s32.totalorder %s24, 1
      %p152 = por %p150, %p151
      %p154 = scmp.ne.s32.totalorder %s139, %s153
      %p155 = scmp.eq.s32.totalorder %s24, 0
      %p156 = por %p154, %p155
      %s158 = sadd.s32 %s157, 1
      %p161 = scmp.eq.s32.totalorder %s18, 1
      %p162 = scmp.ne.s32.totalorder %s157, %s159
      %p163 = scmp.eq.s32.totalorder %s18, 0
      %p164 = por %p162, %p163
      %p165 = scmp.ne.s32.totalorder %s157, %s159
      %p166 = scmp.eq.s32.totalorder %s23, 1
      %p167 = por %p165, %p166
      %p168 = scmp.ne.s32.totalorder %s159, %s160
      %p169 = scmp.eq.s32.totalorder %s23, 0
      %p170 = por %p168, %p169
      %p171 = scmp.ne.s32.totalorder %s159, %s160
      %p172 = scmp.eq.s32.totalorder %s24, 1
      %p173 = por %p171, %p172
      %p175 = scmp.ne.s32.totalorder %s160, %s174
      %p176 = scmp.eq.s32.totalorder %s24, 0
      %p177 = por %p175, %p176
      %s179 = sadd.s32 %s178, 1
      %p182 = scmp.eq.s32.totalorder %s18, 1
      %p183 = scmp.ne.s32.totalorder %s178, %s180
      %p184 = scmp.eq.s32.totalorder %s18, 0
      %p185 = por %p183, %p184
      %p186 = scmp.ne.s32.totalorder %s178, %s180
      %p187 = scmp.eq.s32.totalorder %s23, 1
      %p188 = por %p186, %p187
      %p189 = scmp.ne.s32.totalorder %s180, %s181
      %p190 = scmp.eq.s32.totalorder %s23, 0
      %p191 = por %p189, %p190
      %p192 = scmp.ne.s32.totalorder %s180, %s181
      %p193 = scmp.eq.s32.totalorder %s24, 1
      %p194 = por %p192, %p193
      %p196 = scmp.ne.s32.totalorder %s181, %s195
      %p197 = scmp.eq.s32.totalorder %s24, 0
      %p198 = por %p196, %p197
      %s200 = sadd.s32 %s199, 1
      %p203 = scmp.eq.s32.totalorder %s18, 1
      %p204 = scmp.ne.s32.totalorder %s199, %s201
      %p205 = scmp.eq.s32.totalorder %s18, 0
      %p206 = por %p204, %p205
      %p207 = scmp.ne.s32.totalorder %s199, %s201
      %p208 = scmp.eq.s32.totalorder %s23, 1
      %p209 = por %p207, %p208
      %p210 = scmp.ne.s32.totalorder %s201, %s202
      %p211 = scmp.eq.s32.totalorder %s23, 0
      %p212 = por %p210, %p211
      %p213 = scmp.ne.s32.totalorder %s201, %s202
      %p214 = scmp.eq.s32.totalorder %s24, 1
      %p215 = por %p213, %p214
      %p217 = scmp.ne.s32.totalorder %s202, %s216
      %p218 = scmp.eq.s32.totalorder %s24, 0
      %p219 = por %p217, %p218
      %s220 = ssub.s32 %s18, %s25
      %p221 = scmp.eq.s32.totalorder %s220, 0
      %s223 = sadd.s32 %s222, 1
      %s224 = scalar_select %p221, %s222, %s223
      %p227 = pneg %p221
      %p228 = scmp.eq.s32.totalorder %s18, 1
      %p229 = por %p227, %p228
      %p230 = scmp.ne.s32.totalorder %s222, %s225
      %p231 = scmp.eq.s32.totalorder %s18, 0
      %p232 = por %p230, %p231
      %p233 = scmp.ne.s32.totalorder %s222, %s225
      %p234 = scmp.eq.s32.totalorder %s23, 1
      %p235 = por %p233, %p234
      %p236 = scmp.ne.s32.totalorder %s225, %s226
      %p237 = scmp.eq.s32.totalorder %s23, 0
      %p238 = por %p236, %p237
      %p239 = scmp.ne.s32.totalorder %s225, %s226
      %p240 = scmp.eq.s32.totalorder %s24, 1
      %p241 = por %p239, %p240
      %p243 = scmp.ne.s32.totalorder %s226, %s242
      %p244 = scmp.eq.s32.totalorder %s24, 0
      %p245 = por %p243, %p244
      %p246 = scmp.le.s32.totalorder 1, %s18
      %p247 = scmp.lt.s32.totalorder %s18, 3
      %p248 = pnand %p246, %p247
      %p249 = pneg %p248
      // Predicated region
      $region9: #{tpu_custom_call.1} parent=5 // pred_check
        _
      $region10: #{tpu_custom_call.1} parent=5 // pred_check_branch
        %251 = sbr.rel (%p248) target = $region12
      $region11: #{tpu_custom_call.1} parent=5 // pred_region
        %s252 = ssub.s32 %s18, 1
        // Predicated region
        $region13: #{tpu_custom_call.1} parent=11 // pred_check
          %p253 = pneg %p65
        $region14: #{tpu_custom_call.1} parent=11 // pred_check_branch
          %255 = sbr.rel (%p253) target = $region16
        $region15: #{tpu_custom_call.1} parent=11 // pred_region
          _
        $region16: #{tpu_custom_call.1} parent=11 // pred_fallthru
          _
        // Predicated region
        $region17: #{tpu_custom_call.1} parent=11 // pred_check
          %p256 = pneg %p86
        $region18: #{tpu_custom_call.1} parent=11 // pred_check_branch
          %258 = sbr.rel (%p256) target = $region20
        $region19: #{tpu_custom_call.1} parent=11 // pred_region
          _
        $region20: #{tpu_custom_call.1} parent=11 // pred_fallthru
          _
        // Predicated region
        $region21: #{tpu_custom_call.1} parent=11 // pred_check
          %p259 = pneg %p107
        $region22: #{tpu_custom_call.1} parent=11 // pred_check_branch
          %261 = sbr.rel (%p259) target = $region24
        $region23: #{tpu_custom_call.1} parent=11 // pred_region
          _
        $region24: #{tpu_custom_call.1} parent=11 // pred_fallthru
          _
        // Predicated region
        $region25: #{tpu_custom_call.1} parent=11 // pred_check
          %p262 = pneg %p128
        $region26: #{tpu_custom_call.1} parent=11 // pred_check_branch
          %264 = sbr.rel (%p262) target = $region28
        $region27: #{tpu_custom_call.1} parent=11 // pred_region
          _
        $region28: #{tpu_custom_call.1} parent=11 // pred_fallthru
          _
        // Predicated region
        $region29: #{tpu_custom_call.1} parent=11 // pred_check
          %p265 = pneg %p149
        $region30: #{tpu_custom_call.1} parent=11 // pred_check_branch
          %267 = sbr.rel (%p265) target = $region32
        $region31: #{tpu_custom_call.1} parent=11 // pred_region
          _
        $region32: #{tpu_custom_call.1} parent=11 // pred_fallthru
          _
        // Predicated region
        $region33: #{tpu_custom_call.1} parent=11 // pred_check
          %p268 = pneg %p170
        $region34: #{tpu_custom_call.1} parent=11 // pred_check_branch
          %270 = sbr.rel (%p268) target = $region36
        $region35: #{tpu_custom_call.1} parent=11 // pred_region
          _
        $region36: #{tpu_custom_call.1} parent=11 // pred_fallthru
          _
        // Predicated region
        $region37: #{tpu_custom_call.1} parent=11 // pred_check
          %p271 = pneg %p191
        $region38: #{tpu_custom_call.1} parent=11 // pred_check_branch
          %273 = sbr.rel (%p271) target = $region40
        $region39: #{tpu_custom_call.1} parent=11 // pred_region
          _
        $region40: #{tpu_custom_call.1} parent=11 // pred_fallthru
          _
        // Predicated region
        $region41: #{tpu_custom_call.1} parent=11 // pred_check
          %p274 = pneg %p212
        $region42: #{tpu_custom_call.1} parent=11 // pred_check_branch
          %276 = sbr.rel (%p274) target = $region44
        $region43: #{tpu_custom_call.1} parent=11 // pred_region
          _
        $region44: #{tpu_custom_call.1} parent=11 // pred_fallthru
          _
      $region12: #{tpu_custom_call.1} parent=5 // pred_fallthru
        _
      %p277 = scmp.lt.s32.totalorder %s18, 2
      // Predicated region
      $region45: #{tpu_custom_call.1} parent=5 // pred_check
        %p278 = pneg %p277
      $region46: #{tpu_custom_call.1} parent=5 // pred_check_branch
        %280 = sbr.rel (%p278) target = $region48
      $region47: #{tpu_custom_call.1} parent=5 // pred_region
        // Predicated region
        $region49: #{tpu_custom_call.1} parent=47 // pred_check
          %p281 = pneg %p38
        $region50: #{tpu_custom_call.1} parent=47 // pred_check_branch
          %283 = sbr.rel (%p281) target = $region52
        $region51: #{tpu_custom_call.1} parent=47 // pred_region
          %s284 = smul.u32 4, %s18
          %p285 = scmp.lt.s32.totalorder %s284, 7
          %s286 = scalar_select %p285, %s284, 7
          %s287 = smul.addr %s286, 8
          %s288 = scalar_lea.vmem %s0, %s287
          %s289 = smul.u32 4, %s18
        $region52: #{tpu_custom_call.1} parent=47 // pred_fallthru
          _
      $region48: #{tpu_custom_call.1} parent=5 // pred_fallthru
        _
      %p290 = scmp.le.s32.totalorder 1, %s18
      %p291 = scmp.lt.s32.totalorder %s18, 3
      %p292 = pnand %p290, %p291
      %p293 = pneg %p292
      // Predicated region
      $region53: #{tpu_custom_call.1} parent=5 // pred_check
        _
      $region54: #{tpu_custom_call.1} parent=5 // pred_check_branch
        %295 = sbr.rel (%p292) target = $region56
      $region55: #{tpu_custom_call.1} parent=5 // pred_region
        %s296 = ssub.s32 %s18, 1
        %s297 = smul.u32 4, %s23
        %p298 = scmp.lt.s32.totalorder %s297, 7
        %s299 = scalar_select %p298, %s297, 7
        %s300 = smul.addr %s299, 8
        %s301 = scalar_lea.vmem %s0, %s300
        %p302 = pneg %p44
        %p303 = pneg %p41
        %p304 = pneg %p65
        %p305 = pneg %p62
        %p306 = pneg %p86
        %p307 = pneg %p83
        %p308 = pneg %p107
        %p309 = pneg %p104
        %p310 = pneg %p128
        %p311 = pneg %p125
        %p312 = pneg %p149
        %p313 = pneg %p146
        %p314 = pneg %p170
        %p315 = pneg %p167
        %p316 = pneg %p191
        %p317 = pneg %p188
        %p318 = pneg %p212
        %p319 = pneg %p209
        %p320 = pneg %p238
        %p321 = pneg %p235
        %s322 = sand.u32 %s225, 1
        %s323 = scalar_lea.sflag [#allocation3], %s322
        %s324 = sand.u32 %s225, 1
        %s325 = smul.addr %s324, 64
        %s326 = scalar_lea.vmem [#allocation2], %s325
        %s327 = smul.u32 4, %s23
        %p328 = scmp.lt.s32.totalorder %s327, 7
        %s329 = scalar_select %p328, %s327, 7
        %s330 = smul.addr %s329, 8
        %s331 = scalar_lea.vmem %s0, %s330
        %s332 = smul.u32 4, %s23
        %s333 = smul.u32 4, %s23
        %v334 = vld [vmem:[%s331] sm:$0xff]
        %v335 = vld [vmem:[%s331 + $0x8] sm:$0xff]
        %v336 = vld [vmem:[%s331 + $0x10] sm:$0xff]
        %v337 = vld [vmem:[%s331 + $0x18] sm:$0xff]
        %v338 = vld [vmem:[%s1] sm:$0xff]
        %v339 = vld [vmem:[%s1 + $0x8] sm:$0xff]
        %v340 = vld [vmem:[%s1 + $0x10] sm:$0xff]
        %v341 = vld [vmem:[%s1 + $0x18] sm:$0xff]
        %v342 = vld [vmem:[%s2] sm:$0xff]
        %v343 = vld [vmem:[%s2 + $0x8] sm:$0xff]
        %v344 = vld [vmem:[%s2 + $0x10] sm:$0xff]
        %v345 = vld [vmem:[%s2 + $0x18] sm:$0xff]
        %347 = vset.pattern.permute.xlu0 0
        %348 = vperm.xlu0 %347, %v342
        %v349 = vpop.permute.xlu0 %348
        %352 = vset.pattern.permute.xlu0 0
        %353 = vperm.xlu0 %352, %v343
        %v354 = vpop.permute.xlu0 %353
        %357 = vset.pattern.permute.xlu0 0
        %358 = vperm.xlu0 %357, %v344
        %v359 = vpop.permute.xlu0 %358
        %362 = vset.pattern.permute.xlu0 0
        %363 = vperm.xlu0 %362, %v345
        %v364 = vpop.permute.xlu0 %363
        %vm366 = vcmask 64512
        %v368 = vsel %vm366, %v338, 0
        %v371 = vsel %vm366, %v339, 0
        %v374 = vsel %vm366, %v340, 0
        %v377 = vsel %vm366, %v341, 0
        %379 = vmatprep.subr.mxu0 0.0
        %380 = vmatpush1.msra.mxu0 0.0
        %381 = vmatprep.subr.mxu0 0.0
        %382 = vmatpush1.msra.mxu0 0.0
        %383 = vmatprep.subr.mxu0 0.0
        %384 = vmatpush1.msra.mxu0 0.0
        %385 = vmatprep.subr.mxu0 0.0
        %386 = vmatpush1.msra.mxu0 0.0
        %387 = vmatprep.subr.mxu0 0.0
        %388 = vmatpush1.msra.mxu0 0.0
        %389 = vmatprep.subr.mxu0 0.0
        %390 = vmatpush1.msra.mxu0 0.0
        %391 = vmatprep.subr.mxu0 0.0
        %392 = vmatpush1.msra.mxu0 0.0
        %393 = vmatprep.subr.mxu0 0.0
        %394 = vmatpush1.msra.mxu0 0.0
        %395 = vmatprep.subr.mxu0 0.0
        %396 = vmatpush1.msra.mxu0 0.0
        %397 = vmatprep.subr.mxu0 0.0
        %398 = vmatpush1.msra.mxu0 0.0
        %399 = vmatprep.subr.mxu0 0.0
        %400 = vmatpush1.msra.mxu0 0.0
        %401 = vmatprep.subr.mxu0 0.0
        %402 = vmatpush1.msra.mxu0 0.0
        %403 = vmatprep.subr.mxu0 0.0
        %404 = vmatpush1.msra.mxu0 0.0
        %405 = vmatprep.subr.mxu0 0.0
        %406 = vmatpush1.msra.mxu0 0.0
        %407 = vmatprep.subr.mxu0 0.0
        %408 = vmatpush1.msra.mxu0 0.0
        %409 = vmatprep.subr.mxu0 %v335
        %410 = vmatpush1.msra.mxu0 %v334
        %411 = vmatprep.subr.mxu0 0.0
        %412 = vmatpush2.msra.mxu0 0.0
        %413 = vmatprep.subr.mxu0 0.0
        %414 = vmatpush2.msra.mxu0 0.0
        %415 = vmatprep.subr.mxu0 0.0
        %416 = vmatpush2.msra.mxu0 0.0
        %417 = vmatprep.subr.mxu0 0.0
        %418 = vmatpush2.msra.mxu0 0.0
        %419 = vmatprep.subr.mxu0 0.0
        %420 = vmatpush2.msra.mxu0 0.0
        %421 = vmatprep.subr.mxu0 0.0
        %422 = vmatpush2.msra.mxu0 0.0
        %423 = vmatprep.subr.mxu0 0.0
        %424 = vmatpush2.msra.mxu0 0.0
        %425 = vmatprep.subr.mxu0 0.0
        %426 = vmatpush2.msra.mxu0 0.0
        %427 = vmatprep.subr.mxu0 0.0
        %428 = vmatpush2.msra.mxu0 0.0
        %429 = vmatprep.subr.mxu0 0.0
        %430 = vmatpush2.msra.mxu0 0.0
        %431 = vmatprep.subr.mxu0 0.0
        %432 = vmatpush2.msra.mxu0 0.0
        %433 = vmatprep.subr.mxu0 0.0
        %434 = vmatpush2.msra.mxu0 0.0
        %435 = vmatprep.subr.mxu0 0.0
        %436 = vmatpush2.msra.mxu0 0.0
        %437 = vmatprep.subr.mxu0 0.0
        %438 = vmatpush2.msra.mxu0 0.0
        %439 = vmatprep.subr.mxu0 0.0
        %440 = vmatpush2.msra.mxu0 0.0
        %441 = vmatprep.subr.mxu0 0.0
        %442 = vmatpush2.msra.mxu0 0.0
        %443 = vmatprep.mubr.f32.mxu0 0.0
        %444 = vmatmul.mubr.f32.gmra.mxu0 %v368
        %v445 = vpop.f32.mrf.mxu0
        %v446 = vadd.f32 %v349, %v445
        %v447 = vpop.f32.mrf.mxu0
        %v448 = vadd.f32 %v349, %v447
        %449 = vmatprep.mubr.f32.mxu0 0.0
        %450 = vmatmul.mubr.f32.gmra.mxu0 %v371
        %v451 = vpop.f32.mrf.mxu0
        %v452 = vadd.f32 %v354, %v451
        %v453 = vpop.f32.mrf.mxu0
        %v454 = vadd.f32 %v354, %v453
        %455 = vmatprep.mubr.f32.mxu0 0.0
        %456 = vmatmul.mubr.f32.gmra.mxu0 %v374
        %v457 = vpop.f32.mrf.mxu0
        %v458 = vadd.f32 %v359, %v457
        %v459 = vpop.f32.mrf.mxu0
        %v460 = vadd.f32 %v359, %v459
        %461 = vmatprep.mubr.f32.mxu0 0.0
        %462 = vmatmul.mubr.f32.gmra.mxu0 %v377
        %v463 = vpop.f32.mrf.mxu0
        %v464 = vadd.f32 %v364, %v463
        %v465 = vpop.f32.mrf.mxu0
        %v466 = vadd.f32 %v364, %v465
        %467 = vdwg.mxu0
        %468 = vmatprep.subr.mxu0 0.0
        %469 = vmatpush1.msra.mxu0 0.0
        %470 = vmatprep.subr.mxu0 0.0
        %471 = vmatpush1.msra.mxu0 0.0
        %472 = vmatprep.subr.mxu0 0.0
        %473 = vmatpush1.msra.mxu0 0.0
        %474 = vmatprep.subr.mxu0 0.0
        %475 = vmatpush1.msra.mxu0 0.0
        %476 = vmatprep.subr.mxu0 0.0
        %477 = vmatpush1.msra.mxu0 0.0
        %478 = vmatprep.subr.mxu0 0.0
        %479 = vmatpush1.msra.mxu0 0.0
        %480 = vmatprep.subr.mxu0 0.0
        %481 = vmatpush1.msra.mxu0 0.0
        %482 = vmatprep.subr.mxu0 0.0
        %483 = vmatpush1.msra.mxu0 0.0
        %484 = vmatprep.subr.mxu0 0.0
        %485 = vmatpush1.msra.mxu0 0.0
        %486 = vmatprep.subr.mxu0 0.0
        %487 = vmatpush1.msra.mxu0 0.0
        %488 = vmatprep.subr.mxu0 0.0
        %489 = vmatpush1.msra.mxu0 0.0
        %490 = vmatprep.subr.mxu0 0.0
        %491 = vmatpush1.msra.mxu0 0.0
        %492 = vmatprep.subr.mxu0 0.0
        %493 = vmatpush1.msra.mxu0 0.0
        %494 = vmatprep.subr.mxu0 0.0
        %495 = vmatpush1.msra.mxu0 0.0
        %496 = vmatprep.subr.mxu0 0.0
        %497 = vmatpush1.msra.mxu0 0.0
        %498 = vmatprep.subr.mxu0 %v337
        %499 = vmatpush1.msra.mxu0 %v336
        %500 = vmatprep.subr.mxu0 0.0
        %501 = vmatpush2.msra.mxu0 0.0
        %502 = vmatprep.subr.mxu0 0.0
        %503 = vmatpush2.msra.mxu0 0.0
        %504 = vmatprep.subr.mxu0 0.0
        %505 = vmatpush2.msra.mxu0 0.0
        %506 = vmatprep.subr.mxu0 0.0
        %507 = vmatpush2.msra.mxu0 0.0
        %508 = vmatprep.subr.mxu0 0.0
        %509 = vmatpush2.msra.mxu0 0.0
        %510 = vmatprep.subr.mxu0 0.0
        %511 = vmatpush2.msra.mxu0 0.0
        %512 = vmatprep.subr.mxu0 0.0
        %513 = vmatpush2.msra.mxu0 0.0
        %514 = vmatprep.subr.mxu0 0.0
        %515 = vmatpush2.msra.mxu0 0.0
        %516 = vmatprep.subr.mxu0 0.0
        %517 = vmatpush2.msra.mxu0 0.0
        %518 = vmatprep.subr.mxu0 0.0
        %519 = vmatpush2.msra.mxu0 0.0
        %520 = vmatprep.subr.mxu0 0.0
        %521 = vmatpush2.msra.mxu0 0.0
        %522 = vmatprep.subr.mxu0 0.0
        %523 = vmatpush2.msra.mxu0 0.0
        %524 = vmatprep.subr.mxu0 0.0
        %525 = vmatpush2.msra.mxu0 0.0
        %526 = vmatprep.subr.mxu0 0.0
        %527 = vmatpush2.msra.mxu0 0.0
        %528 = vmatprep.subr.mxu0 0.0
        %529 = vmatpush2.msra.mxu0 0.0
        %530 = vmatprep.subr.mxu0 0.0
        %531 = vmatpush2.msra.mxu0 0.0
        %532 = vmatprep.mubr.f32.mxu0 0.0
        %533 = vmatmul.mubr.f32.gmra.mxu0 %v368
        %v534 = vpop.f32.mrf.mxu0
        %v535 = vadd.f32 %v349, %v534
        %v536 = vpop.f32.mrf.mxu0
        %v537 = vadd.f32 %v349, %v536
        %538 = vmatprep.mubr.f32.mxu0 0.0
        %539 = vmatmul.mubr.f32.gmra.mxu0 %v371
        %v540 = vpop.f32.mrf.mxu0
        %v541 = vadd.f32 %v354, %v540
        %v542 = vpop.f32.mrf.mxu0
        %v543 = vadd.f32 %v354, %v542
        %544 = vmatprep.mubr.f32.mxu0 0.0
        %545 = vmatmul.mubr.f32.gmra.mxu0 %v374
        %v546 = vpop.f32.mrf.mxu0
        %v547 = vadd.f32 %v359, %v546
        %v548 = vpop.f32.mrf.mxu0
        %v549 = vadd.f32 %v359, %v548
        %550 = vmatprep.mubr.f32.mxu0 0.0
        %551 = vmatmul.mubr.f32.gmra.mxu0 %v377
        %v552 = vpop.f32.mrf.mxu0
        %v553 = vadd.f32 %v364, %v552
        %v554 = vpop.f32.mrf.mxu0
        %v555 = vadd.f32 %v364, %v554
        %556 = vdwg.mxu0
        %v557 = vmax.f32 %v446, 0.0
        %v558 = vmax.f32 %v448, 0.0
        %v559 = vmax.f32 %v535, 0.0
        %v560 = vmax.f32 %v537, 0.0
        %v561 = vmax.f32 %v452, 0.0
        %v562 = vmax.f32 %v454, 0.0
        %v563 = vmax.f32 %v541, 0.0
        %v564 = vmax.f32 %v543, 0.0
        %v565 = vmax.f32 %v458, 0.0
        %v566 = vmax.f32 %v460, 0.0
        %v567 = vmax.f32 %v547, 0.0
        %v568 = vmax.f32 %v549, 0.0
        %v569 = vmax.f32 %v464, 0.0
        %v570 = vmax.f32 %v466, 0.0
        %v571 = vmax.f32 %v553, 0.0
        %v572 = vmax.f32 %v555, 0.0
        %v573 = vld [vmem:[%s3] sm:$0xff]
        %v574 = vld [vmem:[%s3 + $0x8] sm:$0xff]
        %v575 = vld [vmem:[%s3 + $0x10] sm:$0xff]
        %v576 = vld [vmem:[%s3 + $0x18] sm:$0xff]
        %v577 = vld [vmem:[%s4] sm:$0xff]
        %v578 = vld [vmem:[%s4 + $0x8] sm:$0xff]
        %v579 = vld [vmem:[%s4 + $0x10] sm:$0xff]
        %v580 = vld [vmem:[%s4 + $0x18] sm:$0xff]
        %582 = vset.pattern.permute.xlu0 0
        %583 = vperm.xlu0 %582, %v577
        %v584 = vpop.permute.xlu0 %583
        %587 = vset.pattern.permute.xlu0 0
        %588 = vperm.xlu0 %587, %v578
        %v589 = vpop.permute.xlu0 %588
        %592 = vset.pattern.permute.xlu0 0
        %593 = vperm.xlu0 %592, %v579
        %v594 = vpop.permute.xlu0 %593
        %597 = vset.pattern.permute.xlu0 0
        %598 = vperm.xlu0 %597, %v580
        %v599 = vpop.permute.xlu0 %598
        %vm601 = vcmask 261120
        %v603 = vsel %vm601, %v573, 0
        %v606 = vsel %vm601, %v574, 0
        %v609 = vsel %vm601, %v575, 0
        %v612 = vsel %vm601, %v576, 0
        %614 = vmatprep.subr.mxu0 0.0
        %615 = vmatpush1.msra.mxu0 0.0
        %616 = vmatprep.subr.mxu0 0.0
        %617 = vmatpush1.msra.mxu0 0.0
        %618 = vmatprep.subr.mxu0 0.0
        %619 = vmatpush1.msra.mxu0 0.0
        %620 = vmatprep.subr.mxu0 0.0
        %621 = vmatpush1.msra.mxu0 0.0
        %622 = vmatprep.subr.mxu0 0.0
        %623 = vmatpush1.msra.mxu0 0.0
        %624 = vmatprep.subr.mxu0 0.0
        %625 = vmatpush1.msra.mxu0 0.0
        %626 = vmatprep.subr.mxu0 0.0
        %627 = vmatpush1.msra.mxu0 0.0
        %628 = vmatprep.subr.mxu0 0.0
        %629 = vmatpush1.msra.mxu0 0.0
        %630 = vmatprep.subr.mxu0 0.0
        %631 = vmatpush1.msra.mxu0 0.0
        %632 = vmatprep.subr.mxu0 0.0
        %633 = vmatpush1.msra.mxu0 0.0
        %634 = vmatprep.subr.mxu0 0.0
        %635 = vmatpush1.msra.mxu0 0.0
        %636 = vmatprep.subr.mxu0 0.0
        %637 = vmatpush1.msra.mxu0 0.0
        %638 = vmatprep.subr.mxu0 %v570
        %639 = vmatpush1.msra.mxu0 %v569
        %640 = vmatprep.subr.mxu0 %v566
        %641 = vmatpush1.msra.mxu0 %v565
        %642 = vmatprep.subr.mxu0 %v562
        %643 = vmatpush1.msra.mxu0 %v561
        %644 = vmatprep.subr.mxu0 %v558
        %645 = vmatpush1.msra.mxu0 %v557
        %646 = vmatprep.subr.mxu0 0.0
        %647 = vmatpush2.msra.mxu0 0.0
        %648 = vmatprep.subr.mxu0 0.0
        %649 = vmatpush2.msra.mxu0 0.0
        %650 = vmatprep.subr.mxu0 0.0
        %651 = vmatpush2.msra.mxu0 0.0
        %652 = vmatprep.subr.mxu0 0.0
        %653 = vmatpush2.msra.mxu0 0.0
        %654 = vmatprep.subr.mxu0 0.0
        %655 = vmatpush2.msra.mxu0 0.0
        %656 = vmatprep.subr.mxu0 0.0
        %657 = vmatpush2.msra.mxu0 0.0
        %658 = vmatprep.subr.mxu0 0.0
        %659 = vmatpush2.msra.mxu0 0.0
        %660 = vmatprep.subr.mxu0 0.0
        %661 = vmatpush2.msra.mxu0 0.0
        %662 = vmatprep.subr.mxu0 0.0
        %663 = vmatpush2.msra.mxu0 0.0
        %664 = vmatprep.subr.mxu0 0.0
        %665 = vmatpush2.msra.mxu0 0.0
        %666 = vmatprep.subr.mxu0 0.0
        %667 = vmatpush2.msra.mxu0 0.0
        %668 = vmatprep.subr.mxu0 0.0
        %669 = vmatpush2.msra.mxu0 0.0
        %670 = vmatprep.subr.mxu0 0.0
        %671 = vmatpush2.msra.mxu0 0.0
        %672 = vmatprep.subr.mxu0 0.0
        %673 = vmatpush2.msra.mxu0 0.0
        %674 = vmatprep.subr.mxu0 0.0
        %675 = vmatpush2.msra.mxu0 0.0
        %676 = vmatprep.subr.mxu0 0.0
        %677 = vmatpush2.msra.mxu0 0.0
        %678 = vmatprep.mubr.f32.mxu0 0.0
        %679 = vmatmul.mubr.f32.gmra.mxu0 %v603
        %v680 = vpop.f32.mrf.mxu0
        %v681 = vadd.f32 %v584, %v680
        %v682 = vpop.f32.mrf.mxu0
        %v683 = vadd.f32 %v584, %v682
        %684 = vmatprep.mubr.f32.mxu0 0.0
        %685 = vmatmul.mubr.f32.gmra.mxu0 %v606
        %v686 = vpop.f32.mrf.mxu0
        %v687 = vadd.f32 %v589, %v686
        %v688 = vpop.f32.mrf.mxu0
        %v689 = vadd.f32 %v589, %v688
        %690 = vmatprep.mubr.f32.mxu0 0.0
        %691 = vmatmul.mubr.f32.gmra.mxu0 %v609
        %v692 = vpop.f32.mrf.mxu0
        %v693 = vadd.f32 %v594, %v692
        %v694 = vpop.f32.mrf.mxu0
        %v695 = vadd.f32 %v594, %v694
        %696 = vmatprep.mubr.f32.mxu0 0.0
        %697 = vmatmul.mubr.f32.gmra.mxu0 %v612
        %v698 = vpop.f32.mrf.mxu0
        %v699 = vadd.f32 %v599, %v698
        %v700 = vpop.f32.mrf.mxu0
        %v701 = vadd.f32 %v599, %v700
        %702 = vdwg.mxu0
        %703 = vmatprep.subr.mxu0 0.0
        %704 = vmatpush1.msra.mxu0 0.0
        %705 = vmatprep.subr.mxu0 0.0
        %706 = vmatpush1.msra.mxu0 0.0
        %707 = vmatprep.subr.mxu0 0.0
        %708 = vmatpush1.msra.mxu0 0.0
        %709 = vmatprep.subr.mxu0 0.0
        %710 = vmatpush1.msra.mxu0 0.0
        %711 = vmatprep.subr.mxu0 0.0
        %712 = vmatpush1.msra.mxu0 0.0
        %713 = vmatprep.subr.mxu0 0.0
        %714 = vmatpush1.msra.mxu0 0.0
        %715 = vmatprep.subr.mxu0 0.0
        %716 = vmatpush1.msra.mxu0 0.0
        %717 = vmatprep.subr.mxu0 0.0
        %718 = vmatpush1.msra.mxu0 0.0
        %719 = vmatprep.subr.mxu0 0.0
        %720 = vmatpush1.msra.mxu0 0.0
        %721 = vmatprep.subr.mxu0 0.0
        %722 = vmatpush1.msra.mxu0 0.0
        %723 = vmatprep.subr.mxu0 0.0
        %724 = vmatpush1.msra.mxu0 0.0
        %725 = vmatprep.subr.mxu0 0.0
        %726 = vmatpush1.msra.mxu0 0.0
        %727 = vmatprep.subr.mxu0 %v572
        %728 = vmatpush1.msra.mxu0 %v571
        %729 = vmatprep.subr.mxu0 %v568
        %730 = vmatpush1.msra.mxu0 %v567
        %731 = vmatprep.subr.mxu0 %v564
        %732 = vmatpush1.msra.mxu0 %v563
        %733 = vmatprep.subr.mxu0 %v560
        %734 = vmatpush1.msra.mxu0 %v559
        %735 = vmatprep.subr.mxu0 0.0
        %736 = vmatpush2.msra.mxu0 0.0
        %737 = vmatprep.subr.mxu0 0.0
        %738 = vmatpush2.msra.mxu0 0.0
        %739 = vmatprep.subr.mxu0 0.0
        %740 = vmatpush2.msra.mxu0 0.0
        %741 = vmatprep.subr.mxu0 0.0
        %742 = vmatpush2.msra.mxu0 0.0
        %743 = vmatprep.subr.mxu0 0.0
        %744 = vmatpush2.msra.mxu0 0.0
        %745 = vmatprep.subr.mxu0 0.0
        %746 = vmatpush2.msra.mxu0 0.0
        %747 = vmatprep.subr.mxu0 0.0
        %748 = vmatpush2.msra.mxu0 0.0
        %749 = vmatprep.subr.mxu0 0.0
        %750 = vmatpush2.msra.mxu0 0.0
        %751 = vmatprep.subr.mxu0 0.0
        %752 = vmatpush2.msra.mxu0 0.0
        %753 = vmatprep.subr.mxu0 0.0
        %754 = vmatpush2.msra.mxu0 0.0
        %755 = vmatprep.subr.mxu0 0.0
        %756 = vmatpush2.msra.mxu0 0.0
        %757 = vmatprep.subr.mxu0 0.0
        %758 = vmatpush2.msra.mxu0 0.0
        %759 = vmatprep.subr.mxu0 0.0
        %760 = vmatpush2.msra.mxu0 0.0
        %761 = vmatprep.subr.mxu0 0.0
        %762 = vmatpush2.msra.mxu0 0.0
        %763 = vmatprep.subr.mxu0 0.0
        %764 = vmatpush2.msra.mxu0 0.0
        %765 = vmatprep.subr.mxu0 0.0
        %766 = vmatpush2.msra.mxu0 0.0
        %767 = vmatprep.mubr.f32.mxu0 0.0
        %768 = vmatmul.mubr.f32.gmra.mxu0 %v603
        %v769 = vpop.f32.mrf.mxu0
        %v770 = vadd.f32 %v584, %v769
        %v771 = vpop.f32.mrf.mxu0
        %v772 = vadd.f32 %v584, %v771
        %773 = vmatprep.mubr.f32.mxu0 0.0
        %774 = vmatmul.mubr.f32.gmra.mxu0 %v606
        %v775 = vpop.f32.mrf.mxu0
        %v776 = vadd.f32 %v589, %v775
        %v777 = vpop.f32.mrf.mxu0
        %v778 = vadd.f32 %v589, %v777
        %779 = vmatprep.mubr.f32.mxu0 0.0
        %780 = vmatmul.mubr.f32.gmra.mxu0 %v609
        %v781 = vpop.f32.mrf.mxu0
        %v782 = vadd.f32 %v594, %v781
        %v783 = vpop.f32.mrf.mxu0
        %v784 = vadd.f32 %v594, %v783
        %785 = vmatprep.mubr.f32.mxu0 0.0
        %786 = vmatmul.mubr.f32.gmra.mxu0 %v612
        %v787 = vpop.f32.mrf.mxu0
        %v788 = vadd.f32 %v599, %v787
        %v789 = vpop.f32.mrf.mxu0
        %v790 = vadd.f32 %v599, %v789
        %791 = vdwg.mxu0
        %v792 = vmax.f32 %v681, 0.0
        %v793 = vmax.f32 %v683, 0.0
        %v794 = vmax.f32 %v770, 0.0
        %v795 = vmax.f32 %v772, 0.0
        %v796 = vmax.f32 %v687, 0.0
        %v797 = vmax.f32 %v689, 0.0
        %v798 = vmax.f32 %v776, 0.0
        %v799 = vmax.f32 %v778, 0.0
        %v800 = vmax.f32 %v693, 0.0
        %v801 = vmax.f32 %v695, 0.0
        %v802 = vmax.f32 %v782, 0.0
        %v803 = vmax.f32 %v784, 0.0
        %v804 = vmax.f32 %v699, 0.0
        %v805 = vmax.f32 %v701, 0.0
        %v806 = vmax.f32 %v788, 0.0
        %v807 = vmax.f32 %v790, 0.0
        %v808 = vld [vmem:[%s5] sm:$0xff]
        %v809 = vld [vmem:[%s5 + $0x8] sm:$0xff]
        %v810 = vld [vmem:[%s5 + $0x10] sm:$0xff]
        %v811 = vld [vmem:[%s5 + $0x18] sm:$0xff]
        %v812 = vld [vmem:[%s6] sm:$0xff]
        %v813 = vld [vmem:[%s6 + $0x8] sm:$0xff]
        %v814 = vld [vmem:[%s6 + $0x10] sm:$0xff]
        %v815 = vld [vmem:[%s6 + $0x18] sm:$0xff]
        %817 = vset.pattern.permute.xlu0 0
        %818 = vperm.xlu0 %817, %v812
        %v819 = vpop.permute.xlu0 %818
        %822 = vset.pattern.permute.xlu0 0
        %823 = vperm.xlu0 %822, %v813
        %v824 = vpop.permute.xlu0 %823
        %827 = vset.pattern.permute.xlu0 0
        %828 = vperm.xlu0 %827, %v814
        %v829 = vpop.permute.xlu0 %828
        %832 = vset.pattern.permute.xlu0 0
        %833 = vperm.xlu0 %832, %v815
        %v834 = vpop.permute.xlu0 %833
        %v837 = vsel %vm601, %v808, 0
        %v840 = vsel %vm601, %v809, 0
        %v843 = vsel %vm601, %v810, 0
        %v846 = vsel %vm601, %v811, 0
        %848 = vmatprep.subr.mxu0 0.0
        %849 = vmatpush1.msra.mxu0 0.0
        %850 = vmatprep.subr.mxu0 0.0
        %851 = vmatpush1.msra.mxu0 0.0
        %852 = vmatprep.subr.mxu0 0.0
        %853 = vmatpush1.msra.mxu0 0.0
        %854 = vmatprep.subr.mxu0 0.0
        %855 = vmatpush1.msra.mxu0 0.0
        %856 = vmatprep.subr.mxu0 0.0
        %857 = vmatpush1.msra.mxu0 0.0
        %858 = vmatprep.subr.mxu0 0.0
        %859 = vmatpush1.msra.mxu0 0.0
        %860 = vmatprep.subr.mxu0 0.0
        %861 = vmatpush1.msra.mxu0 0.0
        %862 = vmatprep.subr.mxu0 0.0
        %863 = vmatpush1.msra.mxu0 0.0
        %864 = vmatprep.subr.mxu0 0.0
        %865 = vmatpush1.msra.mxu0 0.0
        %866 = vmatprep.subr.mxu0 0.0
        %867 = vmatpush1.msra.mxu0 0.0
        %868 = vmatprep.subr.mxu0 0.0
        %869 = vmatpush1.msra.mxu0 0.0
        %870 = vmatprep.subr.mxu0 0.0
        %871 = vmatpush1.msra.mxu0 0.0
        %872 = vmatprep.subr.mxu0 %v805
        %873 = vmatpush1.msra.mxu0 %v804
        %874 = vmatprep.subr.mxu0 %v801
        %875 = vmatpush1.msra.mxu0 %v800
        %876 = vmatprep.subr.mxu0 %v797
        %877 = vmatpush1.msra.mxu0 %v796
        %878 = vmatprep.subr.mxu0 %v793
        %879 = vmatpush1.msra.mxu0 %v792
        %880 = vmatprep.subr.mxu0 0.0
        %881 = vmatpush2.msra.mxu0 0.0
        %882 = vmatprep.subr.mxu0 0.0
        %883 = vmatpush2.msra.mxu0 0.0
        %884 = vmatprep.subr.mxu0 0.0
        %885 = vmatpush2.msra.mxu0 0.0
        %886 = vmatprep.subr.mxu0 0.0
        %887 = vmatpush2.msra.mxu0 0.0
        %888 = vmatprep.subr.mxu0 0.0
        %889 = vmatpush2.msra.mxu0 0.0
        %890 = vmatprep.subr.mxu0 0.0
        %891 = vmatpush2.msra.mxu0 0.0
        %892 = vmatprep.subr.mxu0 0.0
        %893 = vmatpush2.msra.mxu0 0.0
        %894 = vmatprep.subr.mxu0 0.0
        %895 = vmatpush2.msra.mxu0 0.0
        %896 = vmatprep.subr.mxu0 0.0
        %897 = vmatpush2.msra.mxu0 0.0
        %898 = vmatprep.subr.mxu0 0.0
        %899 = vmatpush2.msra.mxu0 0.0
        %900 = vmatprep.subr.mxu0 0.0
        %901 = vmatpush2.msra.mxu0 0.0
        %902 = vmatprep.subr.mxu0 0.0
        %903 = vmatpush2.msra.mxu0 0.0
        %904 = vmatprep.subr.mxu0 0.0
        %905 = vmatpush2.msra.mxu0 0.0
        %906 = vmatprep.subr.mxu0 0.0
        %907 = vmatpush2.msra.mxu0 0.0
        %908 = vmatprep.subr.mxu0 0.0
        %909 = vmatpush2.msra.mxu0 0.0
        %910 = vmatprep.subr.mxu0 0.0
        %911 = vmatpush2.msra.mxu0 0.0
        %912 = vmatprep.mubr.f32.mxu0 0.0
        %913 = vmatmul.mubr.f32.gmra.mxu0 %v837
        %v914 = vpop.f32.mrf.mxu0
        %v915 = vadd.f32 %v819, %v914
        %v916 = vpop.f32.mrf.mxu0
        %v917 = vadd.f32 %v819, %v916
        %918 = vmatprep.mubr.f32.mxu0 0.0
        %919 = vmatmul.mubr.f32.gmra.mxu0 %v840
        %v920 = vpop.f32.mrf.mxu0
        %v921 = vadd.f32 %v824, %v920
        %v922 = vpop.f32.mrf.mxu0
        %v923 = vadd.f32 %v824, %v922
        %924 = vmatprep.mubr.f32.mxu0 0.0
        %925 = vmatmul.mubr.f32.gmra.mxu0 %v843
        %v926 = vpop.f32.mrf.mxu0
        %v927 = vadd.f32 %v829, %v926
        %v928 = vpop.f32.mrf.mxu0
        %v929 = vadd.f32 %v829, %v928
        %930 = vmatprep.mubr.f32.mxu0 0.0
        %931 = vmatmul.mubr.f32.gmra.mxu0 %v846
        %v932 = vpop.f32.mrf.mxu0
        %v933 = vadd.f32 %v834, %v932
        %v934 = vpop.f32.mrf.mxu0
        %v935 = vadd.f32 %v834, %v934
        %936 = vdwg.mxu0
        %937 = vmatprep.subr.mxu0 0.0
        %938 = vmatpush1.msra.mxu0 0.0
        %939 = vmatprep.subr.mxu0 0.0
        %940 = vmatpush1.msra.mxu0 0.0
        %941 = vmatprep.subr.mxu0 0.0
        %942 = vmatpush1.msra.mxu0 0.0
        %943 = vmatprep.subr.mxu0 0.0
        %944 = vmatpush1.msra.mxu0 0.0
        %945 = vmatprep.subr.mxu0 0.0
        %946 = vmatpush1.msra.mxu0 0.0
        %947 = vmatprep.subr.mxu0 0.0
        %948 = vmatpush1.msra.mxu0 0.0
        %949 = vmatprep.subr.mxu0 0.0
        %950 = vmatpush1.msra.mxu0 0.0
        %951 = vmatprep.subr.mxu0 0.0
        %952 = vmatpush1.msra.mxu0 0.0
        %953 = vmatprep.subr.mxu0 0.0
        %954 = vmatpush1.msra.mxu0 0.0
        %955 = vmatprep.subr.mxu0 0.0
        %956 = vmatpush1.msra.mxu0 0.0
        %957 = vmatprep.subr.mxu0 0.0
        %958 = vmatpush1.msra.mxu0 0.0
        %959 = vmatprep.subr.mxu0 0.0
        %960 = vmatpush1.msra.mxu0 0.0
        %961 = vmatprep.subr.mxu0 %v807
        %962 = vmatpush1.msra.mxu0 %v806
        %963 = vmatprep.subr.mxu0 %v803
        %964 = vmatpush1.msra.mxu0 %v802
        %965 = vmatprep.subr.mxu0 %v799
        %966 = vmatpush1.msra.mxu0 %v798
        %967 = vmatprep.subr.mxu0 %v795
        %968 = vmatpush1.msra.mxu0 %v794
        %969 = vmatprep.subr.mxu0 0.0
        %970 = vmatpush2.msra.mxu0 0.0
        %971 = vmatprep.subr.mxu0 0.0
        %972 = vmatpush2.msra.mxu0 0.0
        %973 = vmatprep.subr.mxu0 0.0
        %974 = vmatpush2.msra.mxu0 0.0
        %975 = vmatprep.subr.mxu0 0.0
        %976 = vmatpush2.msra.mxu0 0.0
        %977 = vmatprep.subr.mxu0 0.0
        %978 = vmatpush2.msra.mxu0 0.0
        %979 = vmatprep.subr.mxu0 0.0
        %980 = vmatpush2.msra.mxu0 0.0
        %981 = vmatprep.subr.mxu0 0.0
        %982 = vmatpush2.msra.mxu0 0.0
        %983 = vmatprep.subr.mxu0 0.0
        %984 = vmatpush2.msra.mxu0 0.0
        %985 = vmatprep.subr.mxu0 0.0
        %986 = vmatpush2.msra.mxu0 0.0
        %987 = vmatprep.subr.mxu0 0.0
        %988 = vmatpush2.msra.mxu0 0.0
        %989 = vmatprep.subr.mxu0 0.0
        %990 = vmatpush2.msra.mxu0 0.0
        %991 = vmatprep.subr.mxu0 0.0
        %992 = vmatpush2.msra.mxu0 0.0
        %993 = vmatprep.subr.mxu0 0.0
        %994 = vmatpush2.msra.mxu0 0.0
        %995 = vmatprep.subr.mxu0 0.0
        %996 = vmatpush2.msra.mxu0 0.0
        %997 = vmatprep.subr.mxu0 0.0
        %998 = vmatpush2.msra.mxu0 0.0
        %999 = vmatprep.subr.mxu0 0.0
        %1000 = vmatpush2.msra.mxu0 0.0
        %1001 = vmatprep.mubr.f32.mxu0 0.0
        %1002 = vmatmul.mubr.f32.gmra.mxu0 %v837
        %v1003 = vpop.f32.mrf.mxu0
        %v1004 = vadd.f32 %v819, %v1003
        %v1005 = vpop.f32.mrf.mxu0
        %v1006 = vadd.f32 %v819, %v1005
        %1007 = vmatprep.mubr.f32.mxu0 0.0
        %1008 = vmatmul.mubr.f32.gmra.mxu0 %v840
        %v1009 = vpop.f32.mrf.mxu0
        %v1010 = vadd.f32 %v824, %v1009
        %v1011 = vpop.f32.mrf.mxu0
        %v1012 = vadd.f32 %v824, %v1011
        %1013 = vmatprep.mubr.f32.mxu0 0.0
        %1014 = vmatmul.mubr.f32.gmra.mxu0 %v843
        %v1015 = vpop.f32.mrf.mxu0
        %v1016 = vadd.f32 %v829, %v1015
        %v1017 = vpop.f32.mrf.mxu0
        %v1018 = vadd.f32 %v829, %v1017
        %1019 = vmatprep.mubr.f32.mxu0 0.0
        %1020 = vmatmul.mubr.f32.gmra.mxu0 %v846
        %v1021 = vpop.f32.mrf.mxu0
        %v1022 = vadd.f32 %v834, %v1021
        %v1023 = vpop.f32.mrf.mxu0
        %v1024 = vadd.f32 %v834, %v1023
        %1025 = vdwg.mxu0
        %v1026 = vadd.f32 %v915, %v446
        %v1027 = vadd.f32 %v917, %v448
        %v1028 = vadd.f32 %v1004, %v535
        %v1029 = vadd.f32 %v1006, %v537
        %v1030 = vadd.f32 %v921, %v452
        %v1031 = vadd.f32 %v923, %v454
        %v1032 = vadd.f32 %v1010, %v541
        %v1033 = vadd.f32 %v1012, %v543
        %v1034 = vadd.f32 %v927, %v458
        %v1035 = vadd.f32 %v929, %v460
        %v1036 = vadd.f32 %v1016, %v547
        %v1037 = vadd.f32 %v1018, %v549
        %v1038 = vadd.f32 %v933, %v464
        %v1039 = vadd.f32 %v935, %v466
        %v1040 = vadd.f32 %v1022, %v553
        %v1041 = vadd.f32 %v1024, %v555
        %v1042 = vmax.f32 %v1026, 0.0
        %v1043 = vmax.f32 %v1027, 0.0
        %v1044 = vmax.f32 %v1028, 0.0
        %v1045 = vmax.f32 %v1029, 0.0
        %v1046 = vmax.f32 %v1030, 0.0
        %v1047 = vmax.f32 %v1031, 0.0
        %v1048 = vmax.f32 %v1032, 0.0
        %v1049 = vmax.f32 %v1033, 0.0
        %v1050 = vmax.f32 %v1034, 0.0
        %v1051 = vmax.f32 %v1035, 0.0
        %v1052 = vmax.f32 %v1036, 0.0
        %v1053 = vmax.f32 %v1037, 0.0
        %v1054 = vmax.f32 %v1038, 0.0
        %v1055 = vmax.f32 %v1039, 0.0
        %v1056 = vmax.f32 %v1040, 0.0
        %v1057 = vmax.f32 %v1041, 0.0
        %v1058 = vld [vmem:[%s7] sm:$0xff]
        %v1059 = vld [vmem:[%s7 + $0x8] sm:$0xff]
        %v1060 = vld [vmem:[%s8] sm:$0xff]
        %v1061 = vld [vmem:[%s8 + $0x8] sm:$0xff]
        %1063 = vset.pattern.permute.xlu0 0
        %1064 = vperm.xlu0 %1063, %v1060
        %v1065 = vpop.permute.xlu0 %1064
        %1068 = vset.pattern.permute.xlu0 0
        %1069 = vperm.xlu0 %1068, %v1061
        %v1070 = vpop.permute.xlu0 %1069
        %v1073 = vsel %vm601, %v1058, 0
        %v1076 = vsel %vm601, %v1059, 0
        %1078 = vmatprep.subr.mxu0 0.0
        %1079 = vmatpush1.msra.mxu0 0.0
        %1080 = vmatprep.subr.mxu0 0.0
        %1081 = vmatpush1.msra.mxu0 0.0
        %1082 = vmatprep.subr.mxu0 0.0
        %1083 = vmatpush1.msra.mxu0 0.0
        %1084 = vmatprep.subr.mxu0 0.0
        %1085 = vmatpush1.msra.mxu0 0.0
        %1086 = vmatprep.subr.mxu0 0.0
        %1087 = vmatpush1.msra.mxu0 0.0
        %1088 = vmatprep.subr.mxu0 0.0
        %1089 = vmatpush1.msra.mxu0 0.0
        %1090 = vmatprep.subr.mxu0 0.0
        %1091 = vmatpush1.msra.mxu0 0.0
        %1092 = vmatprep.subr.mxu0 0.0
        %1093 = vmatpush1.msra.mxu0 0.0
        %1094 = vmatprep.subr.mxu0 0.0
        %1095 = vmatpush1.msra.mxu0 0.0
        %1096 = vmatprep.subr.mxu0 0.0
        %1097 = vmatpush1.msra.mxu0 0.0
        %1098 = vmatprep.subr.mxu0 0.0
        %1099 = vmatpush1.msra.mxu0 0.0
        %1100 = vmatprep.subr.mxu0 0.0
        %1101 = vmatpush1.msra.mxu0 0.0
        %1102 = vmatprep.subr.mxu0 %v1055
        %1103 = vmatpush1.msra.mxu0 %v1054
        %1104 = vmatprep.subr.mxu0 %v1051
        %1105 = vmatpush1.msra.mxu0 %v1050
        %1106 = vmatprep.subr.mxu0 %v1047
        %1107 = vmatpush1.msra.mxu0 %v1046
        %1108 = vmatprep.subr.mxu0 %v1043
        %1109 = vmatpush1.msra.mxu0 %v1042
        %1110 = vmatprep.subr.mxu0 0.0
        %1111 = vmatpush2.msra.mxu0 0.0
        %1112 = vmatprep.subr.mxu0 0.0
        %1113 = vmatpush2.msra.mxu0 0.0
        %1114 = vmatprep.subr.mxu0 0.0
        %1115 = vmatpush2.msra.mxu0 0.0
        %1116 = vmatprep.subr.mxu0 0.0
        %1117 = vmatpush2.msra.mxu0 0.0
        %1118 = vmatprep.subr.mxu0 0.0
        %1119 = vmatpush2.msra.mxu0 0.0
        %1120 = vmatprep.subr.mxu0 0.0
        %1121 = vmatpush2.msra.mxu0 0.0
        %1122 = vmatprep.subr.mxu0 0.0
        %1123 = vmatpush2.msra.mxu0 0.0
        %1124 = vmatprep.subr.mxu0 0.0
        %1125 = vmatpush2.msra.mxu0 0.0
        %1126 = vmatprep.subr.mxu0 0.0
        %1127 = vmatpush2.msra.mxu0 0.0
        %1128 = vmatprep.subr.mxu0 0.0
        %1129 = vmatpush2.msra.mxu0 0.0
        %1130 = vmatprep.subr.mxu0 0.0
        %1131 = vmatpush2.msra.mxu0 0.0
        %1132 = vmatprep.subr.mxu0 0.0
        %1133 = vmatpush2.msra.mxu0 0.0
        %1134 = vmatprep.subr.mxu0 0.0
        %1135 = vmatpush2.msra.mxu0 0.0
        %1136 = vmatprep.subr.mxu0 0.0
        %1137 = vmatpush2.msra.mxu0 0.0
        %1138 = vmatprep.subr.mxu0 0.0
        %1139 = vmatpush2.msra.mxu0 0.0
        %1140 = vmatprep.subr.mxu0 0.0
        %1141 = vmatpush2.msra.mxu0 0.0
        %1142 = vmatprep.mubr.f32.mxu0 0.0
        %1143 = vmatmul.mubr.f32.gmra.mxu0 %v1073
        %v1144 = vpop.f32.mrf.mxu0
        %v1145 = vadd.f32 %v1065, %v1144
        %v1146 = vpop.f32.mrf.mxu0
        %v1147 = vadd.f32 %v1065, %v1146
        %1148 = vmatprep.mubr.f32.mxu0 0.0
        %1149 = vmatmul.mubr.f32.gmra.mxu0 %v1076
        %v1150 = vpop.f32.mrf.mxu0
        %v1151 = vadd.f32 %v1070, %v1150
        %v1152 = vpop.f32.mrf.mxu0
        %v1153 = vadd.f32 %v1070, %v1152
        %1154 = vdwg.mxu0
        %1155 = vmatprep.subr.mxu0 0.0
        %1156 = vmatpush1.msra.mxu0 0.0
        %1157 = vmatprep.subr.mxu0 0.0
        %1158 = vmatpush1.msra.mxu0 0.0
        %1159 = vmatprep.subr.mxu0 0.0
        %1160 = vmatpush1.msra.mxu0 0.0
        %1161 = vmatprep.subr.mxu0 0.0
        %1162 = vmatpush1.msra.mxu0 0.0
        %1163 = vmatprep.subr.mxu0 0.0
        %1164 = vmatpush1.msra.mxu0 0.0
        %1165 = vmatprep.subr.mxu0 0.0
        %1166 = vmatpush1.msra.mxu0 0.0
        %1167 = vmatprep.subr.mxu0 0.0
        %1168 = vmatpush1.msra.mxu0 0.0
        %1169 = vmatprep.subr.mxu0 0.0
        %1170 = vmatpush1.msra.mxu0 0.0
        %1171 = vmatprep.subr.mxu0 0.0
        %1172 = vmatpush1.msra.mxu0 0.0
        %1173 = vmatprep.subr.mxu0 0.0
        %1174 = vmatpush1.msra.mxu0 0.0
        %1175 = vmatprep.subr.mxu0 0.0
        %1176 = vmatpush1.msra.mxu0 0.0
        %1177 = vmatprep.subr.mxu0 0.0
        %1178 = vmatpush1.msra.mxu0 0.0
        %1179 = vmatprep.subr.mxu0 %v1057
        %1180 = vmatpush1.msra.mxu0 %v1056
        %1181 = vmatprep.subr.mxu0 %v1053
        %1182 = vmatpush1.msra.mxu0 %v1052
        %1183 = vmatprep.subr.mxu0 %v1049
        %1184 = vmatpush1.msra.mxu0 %v1048
        %1185 = vmatprep.subr.mxu0 %v1045
        %1186 = vmatpush1.msra.mxu0 %v1044
        %1187 = vmatprep.subr.mxu0 0.0
        %1188 = vmatpush2.msra.mxu0 0.0
        %1189 = vmatprep.subr.mxu0 0.0
        %1190 = vmatpush2.msra.mxu0 0.0
        %1191 = vmatprep.subr.mxu0 0.0
        %1192 = vmatpush2.msra.mxu0 0.0
        %1193 = vmatprep.subr.mxu0 0.0
        %1194 = vmatpush2.msra.mxu0 0.0
        %1195 = vmatprep.subr.mxu0 0.0
        %1196 = vmatpush2.msra.mxu0 0.0
        %1197 = vmatprep.subr.mxu0 0.0
        %1198 = vmatpush2.msra.mxu0 0.0
        %1199 = vmatprep.subr.mxu0 0.0
        %1200 = vmatpush2.msra.mxu0 0.0
        %1201 = vmatprep.subr.mxu0 0.0
        %1202 = vmatpush2.msra.mxu0 0.0
        %1203 = vmatprep.subr.mxu0 0.0
        %1204 = vmatpush2.msra.mxu0 0.0
        %1205 = vmatprep.subr.mxu0 0.0
        %1206 = vmatpush2.msra.mxu0 0.0
        %1207 = vmatprep.subr.mxu0 0.0
        %1208 = vmatpush2.msra.mxu0 0.0
        %1209 = vmatprep.subr.mxu0 0.0
        %1210 = vmatpush2.msra.mxu0 0.0
        %1211 = vmatprep.subr.mxu0 0.0
        %1212 = vmatpush2.msra.mxu0 0.0
        %1213 = vmatprep.subr.mxu0 0.0
        %1214 = vmatpush2.msra.mxu0 0.0
        %1215 = vmatprep.subr.mxu0 0.0
        %1216 = vmatpush2.msra.mxu0 0.0
        %1217 = vmatprep.subr.mxu0 0.0
        %1218 = vmatpush2.msra.mxu0 0.0
        %1219 = vmatprep.mubr.f32.mxu0 0.0
        %1220 = vmatmul.mubr.f32.gmra.mxu0 %v1073
        %v1221 = vpop.f32.mrf.mxu0
        %v1222 = vadd.f32 %v1065, %v1221
        %v1223 = vpop.f32.mrf.mxu0
        %v1224 = vadd.f32 %v1065, %v1223
        %1225 = vmatprep.mubr.f32.mxu0 0.0
        %1226 = vmatmul.mubr.f32.gmra.mxu0 %v1076
        %v1227 = vpop.f32.mrf.mxu0
        %v1228 = vadd.f32 %v1070, %v1227
        %v1229 = vpop.f32.mrf.mxu0
        %v1230 = vadd.f32 %v1070, %v1229
        %1231 = vdwg.mxu0
        %1232 = vst [vmem:[%s326] sm:$0xff] %v1145
        %1233 = vst [vmem:[%s326 + $0x8] sm:$0xff] %v1147
        %1234 = vst [vmem:[%s326 + $0x10] sm:$0xff] %v1222
        %1235 = vst [vmem:[%s326 + $0x18] sm:$0xff] %v1224
        %1236 = vst [vmem:[%s326 + $0x20] sm:$0xff] %v1151
        %1237 = vst [vmem:[%s326 + $0x28] sm:$0xff] %v1153
        %1238 = vst [vmem:[%s326 + $0x30] sm:$0xff] %v1228
        %1239 = vst [vmem:[%s326 + $0x38] sm:$0xff] %v1230
        %s1240 = sand.u32 %s225, 1
        %s1241 = scalar_lea.sflag [#allocation3], %s1240
        %s1242 = sand.u32 %s225, 1
        %s1243 = smul.addr %s1242, 64
        %s1244 = scalar_lea.vmem [#allocation2], %s1243
        // Predicated region
        $region57: #{tpu_custom_call.1} parent=55 // pred_check
          %p1245 = pneg %p235
        $region58: #{tpu_custom_call.1} parent=55 // pred_check_branch
          %1247 = sbr.rel (%p1245) target = $region60
        $region59: #{tpu_custom_call.1} parent=55 // pred_region
          %s1248 = smul.u32 4, %s23
          %s1250 = ssub.s32 1024, 1024
          %1251 = vsyncadd %s1241, %s1250
          %s1252 = smul.addr %s1248, 128
          %s1253 = scalar_lea.hbm %s9, %s1252
          %s1254 = sshll.u32 %s1244, 4
          %s1255 = int_to_ptr.vmem [resolvable:$true] %s1254
          %1260 = dma.vmem_to_hbm [thread:$0]  %s1255, 1024, %s1253, %s1241, 512, 1024, 32
        $region60: #{tpu_custom_call.1} parent=55 // pred_fallthru
          _
      $region56: #{tpu_custom_call.1} parent=5 // pred_fallthru
        _
      %p1261 = scmp.le.s32.totalorder 2, %s18
      // Predicated region
      $region61: #{tpu_custom_call.1} parent=5 // pred_check
        %p1262 = pneg %p1261
      $region62: #{tpu_custom_call.1} parent=5 // pred_check_branch
        %1264 = sbr.rel (%p1262) target = $region64
      $region63: #{tpu_custom_call.1} parent=5 // pred_region
        %s1265 = ssub.s32 %s18, 2
        // Predicated region
        $region65: #{tpu_custom_call.1} parent=63 // pred_check
          %p1266 = pneg %p241
        $region66: #{tpu_custom_call.1} parent=63 // pred_check_branch
          %1268 = sbr.rel (%p1266) target = $region68
        $region67: #{tpu_custom_call.1} parent=63 // pred_region
          %s1269 = sand.u32 %s226, 1
          %s1270 = scalar_lea.sflag [#allocation3], %s1269
          %s1271 = sand.u32 %s226, 1
          %s1272 = smul.addr %s1271, 64
          %s1273 = scalar_lea.vmem [#allocation2], %s1272
          %1274 = dma.done %s1270, 1024
        $region68: #{tpu_custom_call.1} parent=63 // pred_fallthru
          _
      $region64: #{tpu_custom_call.1} parent=5 // pred_fallthru
        _
    $region6: #{tpu_custom_call.1} parent=1 // loop_footer
      %s22 = sadd.s32 1, %s18
    $region7: #{tpu_custom_call.1} parent=1 // loop_footer_branch
      %17 = sbr.rel target = $region3
    $region8: #{tpu_custom_call.1} parent=1 // loop_exit
      _
    %1275 = vsyncpa [#allocation3], 1
    %s1276 = scalar_lea.sflag [#allocation3], 1
    %1277 = vsyncpa %s1276, 1

</llo_original>
